<compile_context>
chip_gen: v6e
topology: v6e:2x2x1
jax: 0.10.0
libtpu: 0.0.40
codegen_flags: <defaults>
</compile_context>

<pallas_src>
import jax
import jax.numpy as jnp
from jax import lax
from jax.experimental import pallas as pl
from jax.experimental.pallas import tpu as pltpu


def _gcn_kernel(x_ref, a_ref, w_ref, b_ref, o_ref):
    # x_ref: (nB, S, K)   a_ref: (nB, S, S)
    # w_ref: (3, K, Hp)   b_ref: (3, 1, Hp)   o_ref: (nB, S, Hp)
    nB, S, K = x_ref.shape
    Hp = o_ref.shape[-1]

    # ---- Linear over all nB*S rows at once (fills the MXU M dimension). ----
    x2 = x_ref[...].reshape(nB * S, K)
    xi = jnp.dot(x2, w_ref[0], preferred_element_type=jnp.float32) + b_ref[0]
    xh = jnp.dot(x2, w_ref[1], preferred_element_type=jnp.float32) + b_ref[1]
    xo = jnp.dot(x2, w_ref[2], preferred_element_type=jnp.float32) + b_ref[2]

    # Message-passing matmuls consume the same (possibly bf16) dtype as A;
    # accumulation stays fp32 and the epilogue (add + ReLU) stays fp32.
    cd = a_ref.dtype
    xh_c = xh.astype(cd)
    xo_c = xo.astype(cd)

    # ---- Per-batch message passing (static unroll; nB is small, which gives
    # the LLO scheduler full visibility).  Stores are lane-dense (Hp % 128
    # == 0) and sublane-aligned (S % 8 == 0). ----
    for bi in range(nB):
        a = a_ref[bi]                                  # (S, S)
        rows = slice(bi * S, (bi + 1) * S)
        # msg_o = A @ xo
        msg_o = jnp.dot(a, xo_c[rows], preferred_element_type=jnp.float32)
        # msg_h = A^T @ xh, expressed as a contraction over A's row dim
        # (no transpose is materialized in source).
        msg_h = lax.dot_general(
            a, xh_c[rows],
            dimension_numbers=(((0,), (0,)), ((), ())),
            preferred_element_type=jnp.float32)
        o_ref[bi] = jnp.maximum(xi[rows] + msg_o + msg_h, 0.0).astype(o_ref.dtype)


def _round_up(n, m):
    return ((n + m - 1) // m) * m


def _block_footprint(nb, Sp, Kp, Hp, in_bytes, out_bytes):
    x_blk = nb * Sp * Kp * in_bytes
    a_blk = nb * Sp * Sp * in_bytes
    o_blk = nb * Sp * Hp * out_bytes
    w_blk = 3 * Kp * Hp * in_bytes
    b_blk = 3 * Hp * 4
    inter = 3 * nb * Sp * Hp * 4          # xi / xh / xo fp32 intermediates
    # inputs/outputs are double-buffered by the pipeline
    return 2 * (x_blk + a_blk + o_blk + w_blk + b_blk) + inter


def _pick_batch_block(B, Sp, Kp, Hp, in_bytes, out_bytes,
                      target_rows=128, max_nb=16,
                      vmem_budget=28 * 1024 * 1024):
    """Batches per grid step: fill ~target_rows of MXU M, stay in VMEM."""
    nb = max(1, min(B, max_nb, max(1, target_rows // Sp)))
    while nb > 1 and _block_footprint(nb, Sp, Kp, Hp, in_bytes,
                                      out_bytes) > vmem_budget:
        nb -= 1
    return nb, _block_footprint(nb, Sp, Kp, Hp, in_bytes, out_bytes)


def gcn_forward(x, connectivity, w, b, *, compute_dtype=None):
    """
    x:            (B, S, inp)    float32
    connectivity: (B, S, S)      float32
    w:            (3*hid, inp)   float32  (PyTorch nn.Linear weight layout)
    b:            (3*hid,)       float32
    returns:      (B, S, hid)    same dtype as x
    """
    B, S, inp = x.shape
    hid = w.shape[0] // 3
    out_dtype = x.dtype

    # Split the packed weight into per-gate blocks: (3, inp, hid).
    w3 = jnp.transpose(w.reshape(3, hid, inp), (0, 2, 1))
    b3 = b.reshape(3, 1, hid)

    # Zero-padding: hid -> mult of 128 (lane-dense output), S -> mult of 8
    # (sublane aligned rows), inp -> mult of 8 (weight sublane dim).
    Hp = _round_up(hid, 128)
    Sp = _round_up(S, 8)
    Kp = _round_up(inp, 8)
    if Hp != hid:
        w3 = jnp.pad(w3, ((0, 0), (0, 0), (0, Hp - hid)))
        b3 = jnp.pad(b3, ((0, 0), (0, 0), (0, Hp - hid)))
    if Kp != inp:
        w3 = jnp.pad(w3, ((0, 0), (0, Kp - inp), (0, 0)))
        x = jnp.pad(x, ((0, 0), (0, 0), (0, Kp - inp)))
    if Sp != S:
        x = jnp.pad(x, ((0, 0), (0, Sp - S), (0, 0)))
        connectivity = jnp.pad(connectivity,
                               ((0, 0), (0, Sp - S), (0, Sp - S)))

    # Optional low-precision MXU inputs (fp32 accumulation in-kernel).
    if compute_dtype is not None:
        x_in = x.astype(compute_dtype)
        a_in = connectivity.astype(compute_dtype)
        w3 = w3.astype(compute_dtype)
    else:
        x_in = x
        a_in = connectivity
    b3 = b3.astype(jnp.float32)

    in_bytes = jnp.dtype(x_in.dtype).itemsize
    out_bytes = jnp.dtype(out_dtype).itemsize
    nB, footprint = _pick_batch_block(B, Sp, Kp, Hp, in_bytes, out_bytes)

    # Pad the batch so the grid divides evenly (zero batches are sliced off).
    Bp = _round_up(B, nB)
    if Bp != B:
        x_in = jnp.pad(x_in, ((0, Bp - B), (0, 0), (0, 0)))
        a_in = jnp.pad(a_in, ((0, Bp - B), (0, 0), (0, 0)))

    vmem_limit = int(min(64 * 1024 * 1024,
                         max(32 * 1024 * 1024, 1.5 * footprint)))

    flops = 2 * Bp * Sp * Kp * (3 * Hp) + 4 * Bp * Sp * Sp * Hp
    bytes_accessed = (x_in.size * in_bytes + a_in.size * in_bytes
                      + w3.size * in_bytes + b3.size * 4
                      + Bp * Sp * Hp * out_bytes)

    grid_spec = pltpu.PrefetchScalarGridSpec(
        num_scalar_prefetch=0,
        grid=(Bp // nB,),
        in_specs=[
            pl.BlockSpec((nB, Sp, Kp), lambda i: (i, 0, 0)),
            pl.BlockSpec((nB, Sp, Sp), lambda i: (i, 0, 0)),
            # Grid-invariant operands (could be single-buffered via
            # pipeline_mode=pl.Buffered(1) to save VMEM at large sizes).
            pl.BlockSpec((3, Kp, Hp), lambda i: (0, 0, 0)),
            pl.BlockSpec((3, 1, Hp), lambda i: (0, 0, 0)),
        ],
        out_specs=pl.BlockSpec((nB, Sp, Hp), lambda i: (i, 0, 0)),
    )

    out = pl.pallas_call(
        _gcn_kernel,
        out_shape=jax.ShapeDtypeStruct((Bp, Sp, Hp), out_dtype),
        grid_spec=grid_spec,
        compiler_params=pltpu.CompilerParams(
            dimension_semantics=("parallel",),
            vmem_limit_bytes=vmem_limit),
        cost_estimate=pl.CostEstimate(
            flops=flops, transcendentals=0, bytes_accessed=bytes_accessed),
    )(x_in, a_in, w3, b3)

    if (Bp, Sp, Hp) != (B, S, hid):
        out = out[:B, :S, :hid]
    return out


def gcn_reference(x, connectivity, w, b):
    hid = w.shape[0] // 3
    t = jnp.einsum("bsi,oi->bso", x, w) + b
    xi, xh, xo = t[..., :hid], t[..., hid:2 * hid], t[..., 2 * hid:]
    msg_o = jnp.einsum("bst,bth->bsh", connectivity, xo)
    msg_h = jnp.einsum("bts,bth->bsh", connectivity, xh)  # conn^T @ xh
    return jnp.maximum(xi + msg_o + msg_h, 0.0)


if __name__ == "__main__":
    B, S, INP, HID = 2, 8, 32, 32

    key = jax.random.PRNGKey(0)
    kx, ka, kw, kb = jax.random.split(key, 4)

    x = jax.random.normal(kx, (B, S, INP), dtype=jnp.float32)
    connectivity = jax.random.uniform(ka, (B, S, S), dtype=jnp.float32)

    # Matches nn.Linear's uniform(-1/sqrt(in), 1/sqrt(in)) init range.
    bound = 1.0 / (INP ** 0.5)
    w = jax.random.uniform(kw, (3 * HID, INP), minval=-bound, maxval=bound,
                           dtype=jnp.float32)   # PyTorch weight layout (out, in)
    b = jax.random.uniform(kb, (3 * HID,), minval=-bound, maxval=bound,
                           dtype=jnp.float32)

    ref = gcn_reference(x, connectivity, w, b)

    # fp32 path: tight check against reference.
    out = jax.block_until_ready(gcn_forward(x, connectivity, w, b))
    assert out.shape == (B, S, HID)
    assert jnp.allclose(out, ref, atol=1e-4, rtol=1e-4), "fp32 mismatch vs reference"

    # bf16 MXU-input path (fp32 accumulation): loose check.
    out_bf16 = jax.block_until_ready(
        gcn_forward(x, connectivity, w, b, compute_dtype=jnp.bfloat16))
    assert out_bf16.shape == (B, S, HID)
    assert jnp.allclose(out_bf16, ref, atol=1e-1, rtol=1e-1), "bf16 mismatch vs reference"

    print("KERNEL_OK")
</pallas_src>

<mosaic_0001>
module attributes {stable_mosaic.version = 11 : i64} {
  func.func @_gcn_kernel(%arg0: i32, %arg1: memref<2x8x32xf32, #tpu.memory_space<vmem>>, %arg2: memref<2x8x8xf32, #tpu.memory_space<vmem>>, %arg3: memref<3x32x128xf32, #tpu.memory_space<vmem>>, %arg4: memref<3x1x128xf32, #tpu.memory_space<vmem>>, %arg5: memref<2x8x128xf32, #tpu.memory_space<vmem>>) attributes {dimension_semantics = [#tpu.dimension_semantics<parallel>], iteration_bounds = array<i64: 1>, scalar_prefetch = 0 : i64, scratch_operands = 0 : i64, tpu.core_type = #tpu.core_type<tc>, window_params = [{transform_indices = @transform_0, window_bounds = array<i64: 2, 8, 32>}, {transform_indices = @transform_1, window_bounds = array<i64: 2, 8, 8>}, {pipeline_mode = #tpu.pipeline_mode<synchronous>, transform_indices = @transform_2, window_bounds = array<i64: 3, 32, 128>}, {pipeline_mode = #tpu.pipeline_mode<synchronous>, transform_indices = @transform_3, window_bounds = array<i64: 3, 1, 128>}, {transform_indices = @transform_4, window_bounds = array<i64: 2, 8, 128>}]} {
    %c0 = arith.constant 0 : index
    %c0_0 = arith.constant 0 : index
    %c0_1 = arith.constant 0 : index
    %0 = vector.load %arg1[%c0, %c0_0, %c0_1] : memref<2x8x32xf32, #tpu.memory_space<vmem>>, vector<2x8x32xf32>
    %1 = vector.shape_cast %0 : vector<2x8x32xf32> to vector<16x32xf32>
    %c0_2 = arith.constant 0 : index
    %c0_3 = arith.constant 0 : index
    %c0_4 = arith.constant 0 : index
    %2 = vector.load %arg3[%c0_2, %c0_3, %c0_4] : memref<3x32x128xf32, #tpu.memory_space<vmem>>, vector<1x32x128xf32>
    %3 = vector.shape_cast %2 : vector<1x32x128xf32> to vector<32x128xf32>
    %cst = arith.constant dense<0.000000e+00> : vector<16x128xf32>
    %4 = tpu.matmul %1, %3, %cst {dimension_numbers = #tpu.dot_dimension_numbers<[1], [0], [0], [1], [0, 0, 1, 1], [], []>} : vector<16x32xf32>, vector<32x128xf32>, vector<16x128xf32> -> vector<16x128xf32>
    %c0_5 = arith.constant 0 : index
    %c0_6 = arith.constant 0 : index
    %c0_7 = arith.constant 0 : index
    %5 = vector.load %arg4[%c0_5, %c0_6, %c0_7] : memref<3x1x128xf32, #tpu.memory_space<vmem>>, vector<1x1x128xf32>
    %6 = vector.shape_cast %5 : vector<1x1x128xf32> to vector<1x128xf32>
    %7 = vector.broadcast %6 : vector<1x128xf32> to vector<16x128xf32>
    %8 = arith.addf %4, %7 : vector<16x128xf32>
    %c1 = arith.constant 1 : index
    %c0_8 = arith.constant 0 : index
    %c0_9 = arith.constant 0 : index
    %9 = vector.load %arg3[%c1, %c0_8, %c0_9] : memref<3x32x128xf32, #tpu.memory_space<vmem>>, vector<1x32x128xf32>
    %10 = vector.shape_cast %9 : vector<1x32x128xf32> to vector<32x128xf32>
    %cst_10 = arith.constant dense<0.000000e+00> : vector<16x128xf32>
    %11 = tpu.matmul %1, %10, %cst_10 {dimension_numbers = #tpu.dot_dimension_numbers<[1], [0], [0], [1], [0, 0, 1, 1], [], []>} : vector<16x32xf32>, vector<32x128xf32>, vector<16x128xf32> -> vector<16x128xf32>
    %c1_11 = arith.constant 1 : index
    %c0_12 = arith.constant 0 : index
    %c0_13 = arith.constant 0 : index
    %12 = vector.load %arg4[%c1_11, %c0_12, %c0_13] : memref<3x1x128xf32, #tpu.memory_space<vmem>>, vector<1x1x128xf32>
    %13 = vector.shape_cast %12 : vector<1x1x128xf32> to vector<1x128xf32>
    %14 = vector.broadcast %13 : vector<1x128xf32> to vector<16x128xf32>
    %15 = arith.addf %11, %14 : vector<16x128xf32>
    %c2 = arith.constant 2 : index
    %c0_14 = arith.constant 0 : index
    %c0_15 = arith.constant 0 : index
    %16 = vector.load %arg3[%c2, %c0_14, %c0_15] : memref<3x32x128xf32, #tpu.memory_space<vmem>>, vector<1x32x128xf32>
    %17 = vector.shape_cast %16 : vector<1x32x128xf32> to vector<32x128xf32>
    %cst_16 = arith.constant dense<0.000000e+00> : vector<16x128xf32>
    %18 = tpu.matmul %1, %17, %cst_16 {dimension_numbers = #tpu.dot_dimension_numbers<[1], [0], [0], [1], [0, 0, 1, 1], [], []>} : vector<16x32xf32>, vector<32x128xf32>, vector<16x128xf32> -> vector<16x128xf32>
    %c2_17 = arith.constant 2 : index
    %c0_18 = arith.constant 0 : index
    %c0_19 = arith.constant 0 : index
    %19 = vector.load %arg4[%c2_17, %c0_18, %c0_19] : memref<3x1x128xf32, #tpu.memory_space<vmem>>, vector<1x1x128xf32>
    %20 = vector.shape_cast %19 : vector<1x1x128xf32> to vector<1x128xf32>
    %21 = vector.broadcast %20 : vector<1x128xf32> to vector<16x128xf32>
    %22 = arith.addf %18, %21 : vector<16x128xf32>
    %c0_20 = arith.constant 0 : index
    %c0_21 = arith.constant 0 : index
    %c0_22 = arith.constant 0 : index
    %23 = vector.load %arg2[%c0_20, %c0_21, %c0_22] : memref<2x8x8xf32, #tpu.memory_space<vmem>>, vector<1x8x8xf32>
    %24 = vector.shape_cast %23 : vector<1x8x8xf32> to vector<8x8xf32>
    %25 = vector.extract_strided_slice %22 {offsets = [0, 0], sizes = [8, 128], strides = [1, 1]} : vector<16x128xf32> to vector<8x128xf32>
    %cst_23 = arith.constant dense<0.000000e+00> : vector<8x128xf32>
    %26 = tpu.matmul %24, %25, %cst_23 {dimension_numbers = #tpu.dot_dimension_numbers<[1], [0], [0], [1], [0, 0, 1, 1], [], []>} : vector<8x8xf32>, vector<8x128xf32>, vector<8x128xf32> -> vector<8x128xf32>
    %27 = vector.extract_strided_slice %15 {offsets = [0, 0], sizes = [8, 128], strides = [1, 1]} : vector<16x128xf32> to vector<8x128xf32>
    %cst_24 = arith.constant dense<0.000000e+00> : vector<8x128xf32>
    %28 = tpu.matmul %24, %27, %cst_24 {dimension_numbers = #tpu.dot_dimension_numbers<[0], [0], [1], [1], [0, 1, 1, 1], [], []>} : vector<8x8xf32>, vector<8x128xf32>, vector<8x128xf32> -> vector<8x128xf32>
    %29 = vector.extract_strided_slice %8 {offsets = [0, 0], sizes = [8, 128], strides = [1, 1]} : vector<16x128xf32> to vector<8x128xf32>
    %30 = arith.addf %29, %26 : vector<8x128xf32>
    %31 = arith.addf %30, %28 : vector<8x128xf32>
    %cst_25 = arith.constant 0.000000e+00 : f32
    %32 = vector.broadcast %cst_25 : f32 to vector<8x128xf32>
    %33 = arith.maximumf %31, %32 : vector<8x128xf32>
    %c0_26 = arith.constant 0 : index
    %c0_27 = arith.constant 0 : index
    %c0_28 = arith.constant 0 : index
    %34 = vector.load %arg5[%c0_26, %c0_27, %c0_28] : memref<2x8x128xf32, #tpu.memory_space<vmem>>, vector<1x8x128xf32>
    %35 = vector.shape_cast %34 : vector<1x8x128xf32> to vector<8x128xf32>
    %36 = vector.shape_cast %33 : vector<8x128xf32> to vector<1x8x128xf32>
    tpu.vector_store %arg5[%c0_26, %c0_27, %c0_28], %36 {strides = array<i32>} : memref<2x8x128xf32, #tpu.memory_space<vmem>>, vector<1x8x128xf32>,
    %c1_29 = arith.constant 1 : index
    %c0_30 = arith.constant 0 : index
    %c0_31 = arith.constant 0 : index
    %37 = vector.load %arg2[%c1_29, %c0_30, %c0_31] : memref<2x8x8xf32, #tpu.memory_space<vmem>>, vector<1x8x8xf32>
    %38 = vector.shape_cast %37 : vector<1x8x8xf32> to vector<8x8xf32>
    %39 = vector.extract_strided_slice %22 {offsets = [8, 0], sizes = [8, 128], strides = [1, 1]} : vector<16x128xf32> to vector<8x128xf32>
    %cst_32 = arith.constant dense<0.000000e+00> : vector<8x128xf32>
    %40 = tpu.matmul %38, %39, %cst_32 {dimension_numbers = #tpu.dot_dimension_numbers<[1], [0], [0], [1], [0, 0, 1, 1], [], []>} : vector<8x8xf32>, vector<8x128xf32>, vector<8x128xf32> -> vector<8x128xf32>
    %41 = vector.extract_strided_slice %15 {offsets = [8, 0], sizes = [8, 128], strides = [1, 1]} : vector<16x128xf32> to vector<8x128xf32>
    %cst_33 = arith.constant dense<0.000000e+00> : vector<8x128xf32>
    %42 = tpu.matmul %38, %41, %cst_33 {dimension_numbers = #tpu.dot_dimension_numbers<[0], [0], [1], [1], [0, 1, 1, 1], [], []>} : vector<8x8xf32>, vector<8x128xf32>, vector<8x128xf32> -> vector<8x128xf32>
    %43 = vector.extract_strided_slice %8 {offsets = [8, 0], sizes = [8, 128], strides = [1, 1]} : vector<16x128xf32> to vector<8x128xf32>
    %44 = arith.addf %43, %40 : vector<8x128xf32>
    %45 = arith.addf %44, %42 : vector<8x128xf32>
    %cst_34 = arith.constant 0.000000e+00 : f32
    %46 = vector.broadcast %cst_34 : f32 to vector<8x128xf32>
    %47 = arith.maximumf %45, %46 : vector<8x128xf32>
    %c1_35 = arith.constant 1 : index
    %c0_36 = arith.constant 0 : index
    %c0_37 = arith.constant 0 : index
    %48 = vector.load %arg5[%c1_35, %c0_36, %c0_37] : memref<2x8x128xf32, #tpu.memory_space<vmem>>, vector<1x8x128xf32>
    %49 = vector.shape_cast %48 : vector<1x8x128xf32> to vector<8x128xf32>
    %50 = vector.shape_cast %47 : vector<8x128xf32> to vector<1x8x128xf32>
    tpu.vector_store %arg5[%c1_35, %c0_36, %c0_37], %50 {strides = array<i32>} : memref<2x8x128xf32, #tpu.memory_space<vmem>>, vector<1x8x128xf32>,
    return
  }
  func.func @transform_0(%arg0: i32) -> (i32, i32, i32) {
    %c0_i32 = arith.constant 0 : i32
    %c0_i32_0 = arith.constant 0 : i32
    %c0_i32_1 = arith.constant 0 : i32
    return %arg0, %c0_i32, %c0_i32_0 : i32, i32, i32
  }
  func.func @transform_1(%arg0: i32) -> (i32, i32, i32) {
    %c0_i32 = arith.constant 0 : i32
    %c0_i32_0 = arith.constant 0 : i32
    %c0_i32_1 = arith.constant 0 : i32
    return %arg0, %c0_i32, %c0_i32_0 : i32, i32, i32
  }
  func.func @transform_2(%arg0: i32) -> (i32, i32, i32) {
    %c0_i32 = arith.constant 0 : i32
    %c0_i32_0 = arith.constant 0 : i32
    %c0_i32_1 = arith.constant 0 : i32
    %c0_i32_2 = arith.constant 0 : i32
    return %c0_i32, %c0_i32_0, %c0_i32_1 : i32, i32, i32
  }
  func.func @transform_3(%arg0: i32) -> (i32, i32, i32) {
    %c0_i32 = arith.constant 0 : i32
    %c0_i32_0 = arith.constant 0 : i32
    %c0_i32_1 = arith.constant 0 : i32
    %c0_i32_2 = arith.constant 0 : i32
    return %c0_i32, %c0_i32_0, %c0_i32_1 : i32, i32, i32
  }
  func.func @transform_4(%arg0: i32) -> (i32, i32, i32) {
    %c0_i32 = arith.constant 0 : i32
    %c0_i32_0 = arith.constant 0 : i32
    %c0_i32_1 = arith.constant 0 : i32
    return %arg0, %c0_i32, %c0_i32_0 : i32, i32, i32
  }
}

</mosaic_0001>

<llo_original>
// kernel: tpu_custom_call.1
$region0: #{tpu_custom_call.1}
  #allocation0 [shape = 'u32[]', space=smem, size = 0x4, offset = 0x4, fixed_abs, tag = 'smem constant byte address 0x4 - core index']
  #allocation1 [shape = 'u32[144,128]{1,0:T(1,128)}', space=vmem, size = 0x12000, scoped, tag = 'internal scratch']
  %s0 = inlined_call_operand.hbm [shape: f32[2,8,32], index: 0, kind: input, shape index: {}]
  %s1 = inlined_call_operand.hbm [shape: f32[2,8,8], index: 1, kind: input, shape index: {}]
  %s2 = inlined_call_operand.hbm [shape: f32[3,32,128], index: 2, kind: input, shape index: {}]
  %s3 = inlined_call_operand.vmem [shape: f32[3,1,128], index: 3, kind: input, shape index: {}]
  %s4 = inlined_call_operand.hbm [shape: f32[2,8,128], index: 4, kind: output, shape index: {}]
  %s5 = sld [smem:[#allocation0]]
  $region38: #{tpu_custom_call.1} parent=0
    _
  %s7 = ssub.s32 1, %s5
  %s8 = scalar_select 0, %s7, %s5
  $region1: #{tpu_custom_call.1} parent=0
    #allocation2 [shape = 'u8[8192]{0}', space=vmem, size = 0x2000, scoped, tag = 'input window, operand 0, single buffered']
    #allocation3 [shape = 's32[1]{0}', space=sflag, size = 0x4, scoped, tag = 'scoped memory for tpu_custom_call.1']
    #allocation4 [shape = 's32[1]{0}', space=sflag, size = 0x4, scoped, tag = 'scoped memory for tpu_custom_call.1']
    #allocation5 [shape = 'u8[8192]{0}', space=vmem, size = 0x2000, scoped, tag = 'input window, operand 1, single buffered']
    #allocation6 [shape = 's32[1]{0}', space=sflag, size = 0x4, scoped, tag = 'scoped memory for tpu_custom_call.1']
    #allocation7 [shape = 'u8[49152]{0}', space=vmem, size = 0xc000, scoped, tag = 'input window, operand 2, single buffered']
    #allocation8 [shape = 'u8[8192]{0}', space=vmem, size = 0x2000, scoped, tag = 'output window, operand 0, single buffered']
    %9 = vsyncpa [#allocation3], 0
    %10 = vsyncpa [#allocation6], 0
    %11 = vsyncpa [#allocation4], 0
    // Predicated region
    $region2: #{tpu_custom_call.1} parent=1 // pred_check
      _
    $region3: #{tpu_custom_call.1} parent=1 // pred_check_branch
      %13 = sbr.rel (0) target = $region5
    $region4: #{tpu_custom_call.1} parent=1 // pred_region
      %s15 = ssub.s32 256, 256
      %16 = vsyncadd [#allocation3], %s15
      %s17 = sshll.u32 [#allocation2], 4
      %s18 = int_to_ptr.vmem [resolvable:$true] %s17
      %23 = dma.hbm_to_vmem [thread:$0]  %s0, 256, %s18, [#allocation3], 128, 128, 8
    $region5: #{tpu_custom_call.1} parent=1 // pred_fallthru
      _
    // Predicated region
    $region6: #{tpu_custom_call.1} parent=1 // pred_check
      _
    $region7: #{tpu_custom_call.1} parent=1 // pred_check_branch
      %25 = sbr.rel (0) target = $region9
    $region8: #{tpu_custom_call.1} parent=1 // pred_region
      %s27 = ssub.s32 256, 256
      %28 = vsyncadd [#allocation6], %s27
      %s29 = sshll.u32 [#allocation5], 4
      %s30 = int_to_ptr.vmem [resolvable:$true] %s29
      %35 = dma.hbm_to_vmem [thread:$0]  %s1, 256, %s30, [#allocation6], 128, 128, 8
    $region9: #{tpu_custom_call.1} parent=1 // pred_fallthru
      _
    // Predicated region
    $region10: #{tpu_custom_call.1} parent=1 // pred_check
      _
    $region11: #{tpu_custom_call.1} parent=1 // pred_check_branch
      %37 = sbr.rel (0) target = $region13
    $region12: #{tpu_custom_call.1} parent=1 // pred_region
      %s39 = ssub.s32 1536, 1536
      %40 = vsyncadd [#allocation6], %s39
      %s41 = sshll.u32 [#allocation7], 4
      %s42 = int_to_ptr.vmem [resolvable:$true] %s41
      %47 = dma.hbm_to_vmem [thread:$0]  %s2, 1536, %s42, [#allocation6], 128, 128, 8
    $region13: #{tpu_custom_call.1} parent=1 // pred_fallthru
      _
    // Predicated region
    $region14: #{tpu_custom_call.1} parent=1 // pred_check
      _
    $region15: #{tpu_custom_call.1} parent=1 // pred_check_branch
      %49 = sbr.rel (0) target = $region17
    $region16: #{tpu_custom_call.1} parent=1 // pred_region
      _
    $region17: #{tpu_custom_call.1} parent=1 // pred_fallthru
      _
    // Predicated region
    $region18: #{tpu_custom_call.1} parent=1 // pred_check
      _
    $region19: #{tpu_custom_call.1} parent=1 // pred_check_branch
      %51 = sbr.rel (0) target = $region21
    $region20: #{tpu_custom_call.1} parent=1 // pred_region
      %52 = dma.done [#allocation3], 256
    $region21: #{tpu_custom_call.1} parent=1 // pred_fallthru
      _
    // Predicated region
    $region22: #{tpu_custom_call.1} parent=1 // pred_check
      _
    $region23: #{tpu_custom_call.1} parent=1 // pred_check_branch
      %54 = sbr.rel (0) target = $region25
    $region24: #{tpu_custom_call.1} parent=1 // pred_region
      %55 = dma.done [#allocation6], 256
    $region25: #{tpu_custom_call.1} parent=1 // pred_fallthru
      _
    // Predicated region
    $region26: #{tpu_custom_call.1} parent=1 // pred_check
      _
    $region27: #{tpu_custom_call.1} parent=1 // pred_check_branch
      %57 = sbr.rel (0) target = $region29
    $region28: #{tpu_custom_call.1} parent=1 // pred_region
      %58 = dma.done [#allocation6], 1536
    $region29: #{tpu_custom_call.1} parent=1 // pred_fallthru
      _
    %v59 = vld [vmem:[#allocation2] sm:$0xff]
    %v60 = vld [vmem:[#allocation2 + $0x8] sm:$0xff]
    %v61 = vld [vmem:[#allocation7] sm:$0xff]
    %v62 = vld [vmem:[#allocation7 + $0x8] sm:$0xff]
    %v63 = vld [vmem:[#allocation7 + $0x10] sm:$0xff]
    %v64 = vld [vmem:[#allocation7 + $0x18] sm:$0xff]
    %v65 = vld [vmem:[%s3] sm:$0x1]
    %v67 = vlaneseq
    %v68 = vshrl.u32 %v67, 7
    %v69 = vsub.s32 0, %v68
    %v70 = vrot.slane %v65, %v69
    %vm72 = vcmask 261120
    %v74 = vsel %vm72, %v59, 0
    %v77 = vsel %vm72, %v60, 0
    %79 = vmatprep.subr.mxu0 0.0
    %80 = vmatpush1.msra.mxu0 0.0
    %81 = vmatprep.subr.mxu0 0.0
    %82 = vmatpush1.msra.mxu0 0.0
    %83 = vmatprep.subr.mxu0 0.0
    %84 = vmatpush1.msra.mxu0 0.0
    %85 = vmatprep.subr.mxu0 0.0
    %86 = vmatpush1.msra.mxu0 0.0
    %87 = vmatprep.subr.mxu0 0.0
    %88 = vmatpush1.msra.mxu0 0.0
    %89 = vmatprep.subr.mxu0 0.0
    %90 = vmatpush1.msra.mxu0 0.0
    %91 = vmatprep.subr.mxu0 0.0
    %92 = vmatpush1.msra.mxu0 0.0
    %93 = vmatprep.subr.mxu0 0.0
    %94 = vmatpush1.msra.mxu0 0.0
    %95 = vmatprep.subr.mxu0 0.0
    %96 = vmatpush1.msra.mxu0 0.0
    %97 = vmatprep.subr.mxu0 0.0
    %98 = vmatpush1.msra.mxu0 0.0
    %99 = vmatprep.subr.mxu0 0.0
    %100 = vmatpush1.msra.mxu0 0.0
    %101 = vmatprep.subr.mxu0 0.0
    %102 = vmatpush1.msra.mxu0 0.0
    %103 = vmatprep.subr.mxu0 0.0
    %104 = vmatpush1.msra.mxu0 %v64
    %105 = vmatprep.subr.mxu0 0.0
    %106 = vmatpush1.msra.mxu0 %v63
    %107 = vmatprep.subr.mxu0 0.0
    %108 = vmatpush1.msra.mxu0 %v62
    %109 = vmatprep.subr.mxu0 0.0
    %110 = vmatpush1.msra.mxu0 %v61
    %111 = vmatprep.subr.mxu0 0.0
    %112 = vmatpush2.msra.mxu0 0.0
    %113 = vmatprep.subr.mxu0 0.0
    %114 = vmatpush2.msra.mxu0 0.0
    %115 = vmatprep.subr.mxu0 0.0
    %116 = vmatpush2.msra.mxu0 0.0
    %117 = vmatprep.subr.mxu0 0.0
    %118 = vmatpush2.msra.mxu0 0.0
    %119 = vmatprep.subr.mxu0 0.0
    %120 = vmatpush2.msra.mxu0 0.0
    %121 = vmatprep.subr.mxu0 0.0
    %122 = vmatpush2.msra.mxu0 0.0
    %123 = vmatprep.subr.mxu0 0.0
    %124 = vmatpush2.msra.mxu0 0.0
    %125 = vmatprep.subr.mxu0 0.0
    %126 = vmatpush2.msra.mxu0 0.0
    %127 = vmatprep.subr.mxu0 0.0
    %128 = vmatpush2.msra.mxu0 0.0
    %129 = vmatprep.subr.mxu0 0.0
    %130 = vmatpush2.msra.mxu0 0.0
    %131 = vmatprep.subr.mxu0 0.0
    %132 = vmatpush2.msra.mxu0 0.0
    %133 = vmatprep.subr.mxu0 0.0
    %134 = vmatpush2.msra.mxu0 0.0
    %135 = vmatprep.subr.mxu0 0.0
    %136 = vmatpush2.msra.mxu0 0.0
    %137 = vmatprep.subr.mxu0 0.0
    %138 = vmatpush2.msra.mxu0 0.0
    %139 = vmatprep.subr.mxu0 0.0
    %140 = vmatpush2.msra.mxu0 0.0
    %141 = vmatprep.subr.mxu0 0.0
    %142 = vmatpush2.msra.mxu0 0.0
    %143 = vmatprep.mubr.f32.mxu0 0.0
    %144 = vmatmul.mubr.f32.gmra.mxu0 %v74
    %v145 = vpop.f32.mrf.mxu0
    %v146 = vadd.f32 %v70, %v145
    %v147 = vpop.f32.mrf.mxu0
    %148 = vmatprep.mubr.f32.mxu0 0.0
    %149 = vmatmul.mubr.f32.gmra.mxu0 %v77
    %v150 = vpop.f32.mrf.mxu0
    %v151 = vadd.f32 %v70, %v150
    %v152 = vpop.f32.mrf.mxu0
    %153 = vdwg.mxu0
    %s154 = scalar_lea.vmem [#allocation7], 32
    %v155 = vld [vmem:[%s154] sm:$0xff]
    %v156 = vld [vmem:[%s154 + $0x8] sm:$0xff]
    %v157 = vld [vmem:[%s154 + $0x10] sm:$0xff]
    %v158 = vld [vmem:[%s154 + $0x18] sm:$0xff]
    %s159 = scalar_lea.vmem %s3, 1
    %v160 = vld [vmem:[%s159] sm:$0x1]
    %v162 = vlaneseq
    %v163 = vshrl.u32 %v162, 7
    %v164 = vsub.s32 0, %v163
    %v165 = vrot.slane %v160, %v164
    %167 = vmatprep.subr.mxu0 0.0
    %168 = vmatpush1.msra.mxu0 0.0
    %169 = vmatprep.subr.mxu0 0.0
    %170 = vmatpush1.msra.mxu0 0.0
    %171 = vmatprep.subr.mxu0 0.0
    %172 = vmatpush1.msra.mxu0 0.0
    %173 = vmatprep.subr.mxu0 0.0
    %174 = vmatpush1.msra.mxu0 0.0
    %175 = vmatprep.subr.mxu0 0.0
    %176 = vmatpush1.msra.mxu0 0.0
    %177 = vmatprep.subr.mxu0 0.0
    %178 = vmatpush1.msra.mxu0 0.0
    %179 = vmatprep.subr.mxu0 0.0
    %180 = vmatpush1.msra.mxu0 0.0
    %181 = vmatprep.subr.mxu0 0.0
    %182 = vmatpush1.msra.mxu0 0.0
    %183 = vmatprep.subr.mxu0 0.0
    %184 = vmatpush1.msra.mxu0 0.0
    %185 = vmatprep.subr.mxu0 0.0
    %186 = vmatpush1.msra.mxu0 0.0
    %187 = vmatprep.subr.mxu0 0.0
    %188 = vmatpush1.msra.mxu0 0.0
    %189 = vmatprep.subr.mxu0 0.0
    %190 = vmatpush1.msra.mxu0 0.0
    %191 = vmatprep.subr.mxu0 0.0
    %192 = vmatpush1.msra.mxu0 %v158
    %193 = vmatprep.subr.mxu0 0.0
    %194 = vmatpush1.msra.mxu0 %v157
    %195 = vmatprep.subr.mxu0 0.0
    %196 = vmatpush1.msra.mxu0 %v156
    %197 = vmatprep.subr.mxu0 0.0
    %198 = vmatpush1.msra.mxu0 %v155
    %199 = vmatprep.subr.mxu0 0.0
    %200 = vmatpush2.msra.mxu0 0.0
    %201 = vmatprep.subr.mxu0 0.0
    %202 = vmatpush2.msra.mxu0 0.0
    %203 = vmatprep.subr.mxu0 0.0
    %204 = vmatpush2.msra.mxu0 0.0
    %205 = vmatprep.subr.mxu0 0.0
    %206 = vmatpush2.msra.mxu0 0.0
    %207 = vmatprep.subr.mxu0 0.0
    %208 = vmatpush2.msra.mxu0 0.0
    %209 = vmatprep.subr.mxu0 0.0
    %210 = vmatpush2.msra.mxu0 0.0
    %211 = vmatprep.subr.mxu0 0.0
    %212 = vmatpush2.msra.mxu0 0.0
    %213 = vmatprep.subr.mxu0 0.0
    %214 = vmatpush2.msra.mxu0 0.0
    %215 = vmatprep.subr.mxu0 0.0
    %216 = vmatpush2.msra.mxu0 0.0
    %217 = vmatprep.subr.mxu0 0.0
    %218 = vmatpush2.msra.mxu0 0.0
    %219 = vmatprep.subr.mxu0 0.0
    %220 = vmatpush2.msra.mxu0 0.0
    %221 = vmatprep.subr.mxu0 0.0
    %222 = vmatpush2.msra.mxu0 0.0
    %223 = vmatprep.subr.mxu0 0.0
    %224 = vmatpush2.msra.mxu0 0.0
    %225 = vmatprep.subr.mxu0 0.0
    %226 = vmatpush2.msra.mxu0 0.0
    %227 = vmatprep.subr.mxu0 0.0
    %228 = vmatpush2.msra.mxu0 0.0
    %229 = vmatprep.subr.mxu0 0.0
    %230 = vmatpush2.msra.mxu0 0.0
    %231 = vmatprep.mubr.f32.mxu0 0.0
    %232 = vmatmul.mubr.f32.gmra.mxu0 %v74
    %v233 = vpop.f32.mrf.mxu0
    %v234 = vadd.f32 %v165, %v233
    %v235 = vpop.f32.mrf.mxu0
    %236 = vmatprep.mubr.f32.mxu0 0.0
    %237 = vmatmul.mubr.f32.gmra.mxu0 %v77
    %v238 = vpop.f32.mrf.mxu0
    %v239 = vadd.f32 %v165, %v238
    %v240 = vpop.f32.mrf.mxu0
    %241 = vdwg.mxu0
    %s242 = scalar_lea.vmem [#allocation7], 64
    %v243 = vld [vmem:[%s242] sm:$0xff]
    %v244 = vld [vmem:[%s242 + $0x8] sm:$0xff]
    %v245 = vld [vmem:[%s242 + $0x10] sm:$0xff]
    %v246 = vld [vmem:[%s242 + $0x18] sm:$0xff]
    %s247 = scalar_lea.vmem %s3, 2
    %v248 = vld [vmem:[%s247] sm:$0x1]
    %v250 = vlaneseq
    %v251 = vshrl.u32 %v250, 7
    %v252 = vsub.s32 0, %v251
    %v253 = vrot.slane %v248, %v252
    %255 = vmatprep.subr.mxu0 0.0
    %256 = vmatpush1.msra.mxu0 0.0
    %257 = vmatprep.subr.mxu0 0.0
    %258 = vmatpush1.msra.mxu0 0.0
    %259 = vmatprep.subr.mxu0 0.0
    %260 = vmatpush1.msra.mxu0 0.0
    %261 = vmatprep.subr.mxu0 0.0
    %262 = vmatpush1.msra.mxu0 0.0
    %263 = vmatprep.subr.mxu0 0.0
    %264 = vmatpush1.msra.mxu0 0.0
    %265 = vmatprep.subr.mxu0 0.0
    %266 = vmatpush1.msra.mxu0 0.0
    %267 = vmatprep.subr.mxu0 0.0
    %268 = vmatpush1.msra.mxu0 0.0
    %269 = vmatprep.subr.mxu0 0.0
    %270 = vmatpush1.msra.mxu0 0.0
    %271 = vmatprep.subr.mxu0 0.0
    %272 = vmatpush1.msra.mxu0 0.0
    %273 = vmatprep.subr.mxu0 0.0
    %274 = vmatpush1.msra.mxu0 0.0
    %275 = vmatprep.subr.mxu0 0.0
    %276 = vmatpush1.msra.mxu0 0.0
    %277 = vmatprep.subr.mxu0 0.0
    %278 = vmatpush1.msra.mxu0 0.0
    %279 = vmatprep.subr.mxu0 0.0
    %280 = vmatpush1.msra.mxu0 %v246
    %281 = vmatprep.subr.mxu0 0.0
    %282 = vmatpush1.msra.mxu0 %v245
    %283 = vmatprep.subr.mxu0 0.0
    %284 = vmatpush1.msra.mxu0 %v244
    %285 = vmatprep.subr.mxu0 0.0
    %286 = vmatpush1.msra.mxu0 %v243
    %287 = vmatprep.subr.mxu0 0.0
    %288 = vmatpush2.msra.mxu0 0.0
    %289 = vmatprep.subr.mxu0 0.0
    %290 = vmatpush2.msra.mxu0 0.0
    %291 = vmatprep.subr.mxu0 0.0
    %292 = vmatpush2.msra.mxu0 0.0
    %293 = vmatprep.subr.mxu0 0.0
    %294 = vmatpush2.msra.mxu0 0.0
    %295 = vmatprep.subr.mxu0 0.0
    %296 = vmatpush2.msra.mxu0 0.0
    %297 = vmatprep.subr.mxu0 0.0
    %298 = vmatpush2.msra.mxu0 0.0
    %299 = vmatprep.subr.mxu0 0.0
    %300 = vmatpush2.msra.mxu0 0.0
    %301 = vmatprep.subr.mxu0 0.0
    %302 = vmatpush2.msra.mxu0 0.0
    %303 = vmatprep.subr.mxu0 0.0
    %304 = vmatpush2.msra.mxu0 0.0
    %305 = vmatprep.subr.mxu0 0.0
    %306 = vmatpush2.msra.mxu0 0.0
    %307 = vmatprep.subr.mxu0 0.0
    %308 = vmatpush2.msra.mxu0 0.0
    %309 = vmatprep.subr.mxu0 0.0
    %310 = vmatpush2.msra.mxu0 0.0
    %311 = vmatprep.subr.mxu0 0.0
    %312 = vmatpush2.msra.mxu0 0.0
    %313 = vmatprep.subr.mxu0 0.0
    %314 = vmatpush2.msra.mxu0 0.0
    %315 = vmatprep.subr.mxu0 0.0
    %316 = vmatpush2.msra.mxu0 0.0
    %317 = vmatprep.subr.mxu0 0.0
    %318 = vmatpush2.msra.mxu0 0.0
    %319 = vmatprep.mubr.f32.mxu0 0.0
    %320 = vmatmul.mubr.f32.gmra.mxu0 %v74
    %v321 = vpop.f32.mrf.mxu0
    %v322 = vadd.f32 %v253, %v321
    %v323 = vpop.f32.mrf.mxu0
    %324 = vmatprep.mubr.f32.mxu0 0.0
    %325 = vmatmul.mubr.f32.gmra.mxu0 %v77
    %v326 = vpop.f32.mrf.mxu0
    %v327 = vadd.f32 %v253, %v326
    %v328 = vpop.f32.mrf.mxu0
    %329 = vdwg.mxu0
    %v330 = vld [vmem:[#allocation5] sm:$0xff]
    %vm331 = vcmask 64512
    %v333 = vsel %vm331, %v330, 0
    %335 = vmatprep.subr.mxu0 0.0
    %336 = vmatpush1.msra.mxu0 0.0
    %337 = vmatprep.subr.mxu0 0.0
    %338 = vmatpush1.msra.mxu0 0.0
    %339 = vmatprep.subr.mxu0 0.0
    %340 = vmatpush1.msra.mxu0 0.0
    %341 = vmatprep.subr.mxu0 0.0
    %342 = vmatpush1.msra.mxu0 0.0
    %343 = vmatprep.subr.mxu0 0.0
    %344 = vmatpush1.msra.mxu0 0.0
    %345 = vmatprep.subr.mxu0 0.0
    %346 = vmatpush1.msra.mxu0 0.0
    %347 = vmatprep.subr.mxu0 0.0
    %348 = vmatpush1.msra.mxu0 0.0
    %349 = vmatprep.subr.mxu0 0.0
    %350 = vmatpush1.msra.mxu0 0.0
    %351 = vmatprep.subr.mxu0 0.0
    %352 = vmatpush1.msra.mxu0 0.0
    %353 = vmatprep.subr.mxu0 0.0
    %354 = vmatpush1.msra.mxu0 0.0
    %355 = vmatprep.subr.mxu0 0.0
    %356 = vmatpush1.msra.mxu0 0.0
    %357 = vmatprep.subr.mxu0 0.0
    %358 = vmatpush1.msra.mxu0 0.0
    %359 = vmatprep.subr.mxu0 0.0
    %360 = vmatpush1.msra.mxu0 0.0
    %361 = vmatprep.subr.mxu0 0.0
    %362 = vmatpush1.msra.mxu0 0.0
    %363 = vmatprep.subr.mxu0 0.0
    %364 = vmatpush1.msra.mxu0 0.0
    %365 = vmatprep.subr.mxu0 0.0
    %366 = vmatpush1.msra.mxu0 %v322
    %367 = vmatprep.subr.mxu0 0.0
    %368 = vmatpush2.msra.mxu0 0.0
    %369 = vmatprep.subr.mxu0 0.0
    %370 = vmatpush2.msra.mxu0 0.0
    %371 = vmatprep.subr.mxu0 0.0
    %372 = vmatpush2.msra.mxu0 0.0
    %373 = vmatprep.subr.mxu0 0.0
    %374 = vmatpush2.msra.mxu0 0.0
    %375 = vmatprep.subr.mxu0 0.0
    %376 = vmatpush2.msra.mxu0 0.0
    %377 = vmatprep.subr.mxu0 0.0
    %378 = vmatpush2.msra.mxu0 0.0
    %379 = vmatprep.subr.mxu0 0.0
    %380 = vmatpush2.msra.mxu0 0.0
    %381 = vmatprep.subr.mxu0 0.0
    %382 = vmatpush2.msra.mxu0 0.0
    %383 = vmatprep.subr.mxu0 0.0
    %384 = vmatpush2.msra.mxu0 0.0
    %385 = vmatprep.subr.mxu0 0.0
    %386 = vmatpush2.msra.mxu0 0.0
    %387 = vmatprep.subr.mxu0 0.0
    %388 = vmatpush2.msra.mxu0 0.0
    %389 = vmatprep.subr.mxu0 0.0
    %390 = vmatpush2.msra.mxu0 0.0
    %391 = vmatprep.subr.mxu0 0.0
    %392 = vmatpush2.msra.mxu0 0.0
    %393 = vmatprep.subr.mxu0 0.0
    %394 = vmatpush2.msra.mxu0 0.0
    %395 = vmatprep.subr.mxu0 0.0
    %396 = vmatpush2.msra.mxu0 0.0
    %397 = vmatprep.subr.mxu0 0.0
    %398 = vmatpush2.msra.mxu0 0.0
    %399 = vmatprep.mubr.f32.mxu0 0.0
    %400 = vmatmul.mubr.f32.gmra.mxu0 %v333
    %v401 = vpop.f32.mrf.mxu0
    %v402 = vadd.f32 0.0, %v401
    %v403 = vpop.f32.mrf.mxu0
    %404 = vdwg.mxu0
    %405 = vxpose.xlu0.b32.start [1/16] %v330, 128
    %406 = vxpose.xlu0.b32.cont [2/16] 0.0, 128
    %407 = vxpose.xlu0.b32.cont [3/16] 0.0, 128
    %408 = vxpose.xlu0.b32.cont [4/16] 0.0, 128
    %409 = vxpose.xlu0.b32.cont [5/16] 0.0, 128
    %410 = vxpose.xlu0.b32.cont [6/16] 0.0, 128
    %411 = vxpose.xlu0.b32.cont [7/16] 0.0, 128
    %412 = vxpose.xlu0.b32.cont [8/16] 0.0, 128
    %413 = vxpose.xlu0.b32.cont [9/16] 0.0, 128
    %414 = vxpose.xlu0.b32.cont [10/16] 0.0, 128
    %415 = vxpose.xlu0.b32.cont [11/16] 0.0, 128
    %416 = vxpose.xlu0.b32.cont [12/16] 0.0, 128
    %417 = vxpose.xlu0.b32.cont [13/16] 0.0, 128
    %418 = vxpose.xlu0.b32.cont [14/16] 0.0, 128
    %419 = vxpose.xlu0.b32.cont [15/16] 0.0, 128
    %420 = vxpose.xlu0.b32.end [16/16] 0.0, 128
    %v421 = vpop.trf.xlu0
    %v422 = vpop.trf.xlu0
    %v423 = vpop.trf.xlu0
    %v424 = vpop.trf.xlu0
    %v425 = vpop.trf.xlu0
    %v426 = vpop.trf.xlu0
    %v427 = vpop.trf.xlu0
    %v428 = vpop.trf.xlu0
    %v429 = vpop.trf.xlu0
    %v430 = vpop.trf.xlu0
    %v431 = vpop.trf.xlu0
    %v432 = vpop.trf.xlu0
    %v433 = vpop.trf.xlu0
    %v434 = vpop.trf.xlu0
    %v435 = vpop.trf.xlu0
    %v436 = vpop.trf.xlu0
    %v438 = vsel %vm331, %v421, 0
    %440 = vmatprep.subr.mxu0 0.0
    %441 = vmatpush1.msra.mxu0 0.0
    %442 = vmatprep.subr.mxu0 0.0
    %443 = vmatpush1.msra.mxu0 0.0
    %444 = vmatprep.subr.mxu0 0.0
    %445 = vmatpush1.msra.mxu0 0.0
    %446 = vmatprep.subr.mxu0 0.0
    %447 = vmatpush1.msra.mxu0 0.0
    %448 = vmatprep.subr.mxu0 0.0
    %449 = vmatpush1.msra.mxu0 0.0
    %450 = vmatprep.subr.mxu0 0.0
    %451 = vmatpush1.msra.mxu0 0.0
    %452 = vmatprep.subr.mxu0 0.0
    %453 = vmatpush1.msra.mxu0 0.0
    %454 = vmatprep.subr.mxu0 0.0
    %455 = vmatpush1.msra.mxu0 0.0
    %456 = vmatprep.subr.mxu0 0.0
    %457 = vmatpush1.msra.mxu0 0.0
    %458 = vmatprep.subr.mxu0 0.0
    %459 = vmatpush1.msra.mxu0 0.0
    %460 = vmatprep.subr.mxu0 0.0
    %461 = vmatpush1.msra.mxu0 0.0
    %462 = vmatprep.subr.mxu0 0.0
    %463 = vmatpush1.msra.mxu0 0.0
    %464 = vmatprep.subr.mxu0 0.0
    %465 = vmatpush1.msra.mxu0 0.0
    %466 = vmatprep.subr.mxu0 0.0
    %467 = vmatpush1.msra.mxu0 0.0
    %468 = vmatprep.subr.mxu0 0.0
    %469 = vmatpush1.msra.mxu0 0.0
    %470 = vmatprep.subr.mxu0 0.0
    %471 = vmatpush1.msra.mxu0 %v234
    %472 = vmatprep.subr.mxu0 0.0
    %473 = vmatpush2.msra.mxu0 0.0
    %474 = vmatprep.subr.mxu0 0.0
    %475 = vmatpush2.msra.mxu0 0.0
    %476 = vmatprep.subr.mxu0 0.0
    %477 = vmatpush2.msra.mxu0 0.0
    %478 = vmatprep.subr.mxu0 0.0
    %479 = vmatpush2.msra.mxu0 0.0
    %480 = vmatprep.subr.mxu0 0.0
    %481 = vmatpush2.msra.mxu0 0.0
    %482 = vmatprep.subr.mxu0 0.0
    %483 = vmatpush2.msra.mxu0 0.0
    %484 = vmatprep.subr.mxu0 0.0
    %485 = vmatpush2.msra.mxu0 0.0
    %486 = vmatprep.subr.mxu0 0.0
    %487 = vmatpush2.msra.mxu0 0.0
    %488 = vmatprep.subr.mxu0 0.0
    %489 = vmatpush2.msra.mxu0 0.0
    %490 = vmatprep.subr.mxu0 0.0
    %491 = vmatpush2.msra.mxu0 0.0
    %492 = vmatprep.subr.mxu0 0.0
    %493 = vmatpush2.msra.mxu0 0.0
    %494 = vmatprep.subr.mxu0 0.0
    %495 = vmatpush2.msra.mxu0 0.0
    %496 = vmatprep.subr.mxu0 0.0
    %497 = vmatpush2.msra.mxu0 0.0
    %498 = vmatprep.subr.mxu0 0.0
    %499 = vmatpush2.msra.mxu0 0.0
    %500 = vmatprep.subr.mxu0 0.0
    %501 = vmatpush2.msra.mxu0 0.0
    %502 = vmatprep.subr.mxu0 0.0
    %503 = vmatpush2.msra.mxu0 0.0
    %504 = vmatprep.mubr.f32.mxu0 0.0
    %505 = vmatmul.mubr.f32.gmra.mxu0 %v438
    %v506 = vpop.f32.mrf.mxu0
    %v507 = vadd.f32 0.0, %v506
    %v508 = vpop.f32.mrf.mxu0
    %509 = vdwg.mxu0
    %v510 = vadd.f32 %v146, %v402
    %v511 = vadd.f32 %v510, %v507
    %v512 = vmax.f32 %v511, 0.0
    %513 = vst [vmem:[#allocation8] sm:$0xff] %v512
    %s514 = scalar_lea.vmem [#allocation5], 8
    %v515 = vld [vmem:[%s514] sm:$0xff]
    %v517 = vsel %vm331, %v515, 0
    %519 = vmatprep.subr.mxu0 0.0
    %520 = vmatpush1.msra.mxu0 0.0
    %521 = vmatprep.subr.mxu0 0.0
    %522 = vmatpush1.msra.mxu0 0.0
    %523 = vmatprep.subr.mxu0 0.0
    %524 = vmatpush1.msra.mxu0 0.0
    %525 = vmatprep.subr.mxu0 0.0
    %526 = vmatpush1.msra.mxu0 0.0
    %527 = vmatprep.subr.mxu0 0.0
    %528 = vmatpush1.msra.mxu0 0.0
    %529 = vmatprep.subr.mxu0 0.0
    %530 = vmatpush1.msra.mxu0 0.0
    %531 = vmatprep.subr.mxu0 0.0
    %532 = vmatpush1.msra.mxu0 0.0
    %533 = vmatprep.subr.mxu0 0.0
    %534 = vmatpush1.msra.mxu0 0.0
    %535 = vmatprep.subr.mxu0 0.0
    %536 = vmatpush1.msra.mxu0 0.0
    %537 = vmatprep.subr.mxu0 0.0
    %538 = vmatpush1.msra.mxu0 0.0
    %539 = vmatprep.subr.mxu0 0.0
    %540 = vmatpush1.msra.mxu0 0.0
    %541 = vmatprep.subr.mxu0 0.0
    %542 = vmatpush1.msra.mxu0 0.0
    %543 = vmatprep.subr.mxu0 0.0
    %544 = vmatpush1.msra.mxu0 0.0
    %545 = vmatprep.subr.mxu0 0.0
    %546 = vmatpush1.msra.mxu0 0.0
    %547 = vmatprep.subr.mxu0 0.0
    %548 = vmatpush1.msra.mxu0 0.0
    %549 = vmatprep.subr.mxu0 0.0
    %550 = vmatpush1.msra.mxu0 %v327
    %551 = vmatprep.subr.mxu0 0.0
    %552 = vmatpush2.msra.mxu0 0.0
    %553 = vmatprep.subr.mxu0 0.0
    %554 = vmatpush2.msra.mxu0 0.0
    %555 = vmatprep.subr.mxu0 0.0
    %556 = vmatpush2.msra.mxu0 0.0
    %557 = vmatprep.subr.mxu0 0.0
    %558 = vmatpush2.msra.mxu0 0.0
    %559 = vmatprep.subr.mxu0 0.0
    %560 = vmatpush2.msra.mxu0 0.0
    %561 = vmatprep.subr.mxu0 0.0
    %562 = vmatpush2.msra.mxu0 0.0
    %563 = vmatprep.subr.mxu0 0.0
    %564 = vmatpush2.msra.mxu0 0.0
    %565 = vmatprep.subr.mxu0 0.0
    %566 = vmatpush2.msra.mxu0 0.0
    %567 = vmatprep.subr.mxu0 0.0
    %568 = vmatpush2.msra.mxu0 0.0
    %569 = vmatprep.subr.mxu0 0.0
    %570 = vmatpush2.msra.mxu0 0.0
    %571 = vmatprep.subr.mxu0 0.0
    %572 = vmatpush2.msra.mxu0 0.0
    %573 = vmatprep.subr.mxu0 0.0
    %574 = vmatpush2.msra.mxu0 0.0
    %575 = vmatprep.subr.mxu0 0.0
    %576 = vmatpush2.msra.mxu0 0.0
    %577 = vmatprep.subr.mxu0 0.0
    %578 = vmatpush2.msra.mxu0 0.0
    %579 = vmatprep.subr.mxu0 0.0
    %580 = vmatpush2.msra.mxu0 0.0
    %581 = vmatprep.subr.mxu0 0.0
    %582 = vmatpush2.msra.mxu0 0.0
    %583 = vmatprep.mubr.f32.mxu0 0.0
    %584 = vmatmul.mubr.f32.gmra.mxu0 %v517
    %v585 = vpop.f32.mrf.mxu0
    %v586 = vadd.f32 0.0, %v585
    %v587 = vpop.f32.mrf.mxu0
    %588 = vdwg.mxu0
    %589 = vxpose.xlu0.b32.start [1/16] %v515, 128
    %590 = vxpose.xlu0.b32.cont [2/16] 0.0, 128
    %591 = vxpose.xlu0.b32.cont [3/16] 0.0, 128
    %592 = vxpose.xlu0.b32.cont [4/16] 0.0, 128
    %593 = vxpose.xlu0.b32.cont [5/16] 0.0, 128
    %594 = vxpose.xlu0.b32.cont [6/16] 0.0, 128
    %595 = vxpose.xlu0.b32.cont [7/16] 0.0, 128
    %596 = vxpose.xlu0.b32.cont [8/16] 0.0, 128
    %597 = vxpose.xlu0.b32.cont [9/16] 0.0, 128
    %598 = vxpose.xlu0.b32.cont [10/16] 0.0, 128
    %599 = vxpose.xlu0.b32.cont [11/16] 0.0, 128
    %600 = vxpose.xlu0.b32.cont [12/16] 0.0, 128
    %601 = vxpose.xlu0.b32.cont [13/16] 0.0, 128
    %602 = vxpose.xlu0.b32.cont [14/16] 0.0, 128
    %603 = vxpose.xlu0.b32.cont [15/16] 0.0, 128
    %604 = vxpose.xlu0.b32.end [16/16] 0.0, 128
    %v605 = vpop.trf.xlu0
    %v606 = vpop.trf.xlu0
    %v607 = vpop.trf.xlu0
    %v608 = vpop.trf.xlu0
    %v609 = vpop.trf.xlu0
    %v610 = vpop.trf.xlu0
    %v611 = vpop.trf.xlu0
    %v612 = vpop.trf.xlu0
    %v613 = vpop.trf.xlu0
    %v614 = vpop.trf.xlu0
    %v615 = vpop.trf.xlu0
    %v616 = vpop.trf.xlu0
    %v617 = vpop.trf.xlu0
    %v618 = vpop.trf.xlu0
    %v619 = vpop.trf.xlu0
    %v620 = vpop.trf.xlu0
    %v622 = vsel %vm331, %v605, 0
    %624 = vmatprep.subr.mxu0 0.0
    %625 = vmatpush1.msra.mxu0 0.0
    %626 = vmatprep.subr.mxu0 0.0
    %627 = vmatpush1.msra.mxu0 0.0
    %628 = vmatprep.subr.mxu0 0.0
    %629 = vmatpush1.msra.mxu0 0.0
    %630 = vmatprep.subr.mxu0 0.0
    %631 = vmatpush1.msra.mxu0 0.0
    %632 = vmatprep.subr.mxu0 0.0
    %633 = vmatpush1.msra.mxu0 0.0
    %634 = vmatprep.subr.mxu0 0.0
    %635 = vmatpush1.msra.mxu0 0.0
    %636 = vmatprep.subr.mxu0 0.0
    %637 = vmatpush1.msra.mxu0 0.0
    %638 = vmatprep.subr.mxu0 0.0
    %639 = vmatpush1.msra.mxu0 0.0
    %640 = vmatprep.subr.mxu0 0.0
    %641 = vmatpush1.msra.mxu0 0.0
    %642 = vmatprep.subr.mxu0 0.0
    %643 = vmatpush1.msra.mxu0 0.0
    %644 = vmatprep.subr.mxu0 0.0
    %645 = vmatpush1.msra.mxu0 0.0
    %646 = vmatprep.subr.mxu0 0.0
    %647 = vmatpush1.msra.mxu0 0.0
    %648 = vmatprep.subr.mxu0 0.0
    %649 = vmatpush1.msra.mxu0 0.0
    %650 = vmatprep.subr.mxu0 0.0
    %651 = vmatpush1.msra.mxu0 0.0
    %652 = vmatprep.subr.mxu0 0.0
    %653 = vmatpush1.msra.mxu0 0.0
    %654 = vmatprep.subr.mxu0 0.0
    %655 = vmatpush1.msra.mxu0 %v239
    %656 = vmatprep.subr.mxu0 0.0
    %657 = vmatpush2.msra.mxu0 0.0
    %658 = vmatprep.subr.mxu0 0.0
    %659 = vmatpush2.msra.mxu0 0.0
    %660 = vmatprep.subr.mxu0 0.0
    %661 = vmatpush2.msra.mxu0 0.0
    %662 = vmatprep.subr.mxu0 0.0
    %663 = vmatpush2.msra.mxu0 0.0
    %664 = vmatprep.subr.mxu0 0.0
    %665 = vmatpush2.msra.mxu0 0.0
    %666 = vmatprep.subr.mxu0 0.0
    %667 = vmatpush2.msra.mxu0 0.0
    %668 = vmatprep.subr.mxu0 0.0
    %669 = vmatpush2.msra.mxu0 0.0
    %670 = vmatprep.subr.mxu0 0.0
    %671 = vmatpush2.msra.mxu0 0.0
    %672 = vmatprep.subr.mxu0 0.0
    %673 = vmatpush2.msra.mxu0 0.0
    %674 = vmatprep.subr.mxu0 0.0
    %675 = vmatpush2.msra.mxu0 0.0
    %676 = vmatprep.subr.mxu0 0.0
    %677 = vmatpush2.msra.mxu0 0.0
    %678 = vmatprep.subr.mxu0 0.0
    %679 = vmatpush2.msra.mxu0 0.0
    %680 = vmatprep.subr.mxu0 0.0
    %681 = vmatpush2.msra.mxu0 0.0
    %682 = vmatprep.subr.mxu0 0.0
    %683 = vmatpush2.msra.mxu0 0.0
    %684 = vmatprep.subr.mxu0 0.0
    %685 = vmatpush2.msra.mxu0 0.0
    %686 = vmatprep.subr.mxu0 0.0
    %687 = vmatpush2.msra.mxu0 0.0
    %688 = vmatprep.mubr.f32.mxu0 0.0
    %689 = vmatmul.mubr.f32.gmra.mxu0 %v622
    %v690 = vpop.f32.mrf.mxu0
    %v691 = vadd.f32 0.0, %v690
    %v692 = vpop.f32.mrf.mxu0
    %693 = vdwg.mxu0
    %v694 = vadd.f32 %v151, %v586
    %v695 = vadd.f32 %v694, %v691
    %v696 = vmax.f32 %v695, 0.0
    %s697 = scalar_lea.vmem [#allocation8], 8
    %698 = vst [vmem:[%s697] sm:$0xff] %v696
    // Predicated region
    $region30: #{tpu_custom_call.1} parent=1 // pred_check
      _
    $region31: #{tpu_custom_call.1} parent=1 // pred_check_branch
      %700 = sbr.rel (0) target = $region33
    $region32: #{tpu_custom_call.1} parent=1 // pred_region
      %s702 = ssub.s32 256, 256
      %703 = vsyncadd [#allocation4], %s702
      %s704 = sshll.u32 [#allocation8], 4
      %s705 = int_to_ptr.vmem [resolvable:$true] %s704
      %710 = dma.vmem_to_hbm [thread:$0]  %s705, 256, %s4, [#allocation4], 128, 128, 8
    $region33: #{tpu_custom_call.1} parent=1 // pred_fallthru
      _
    // Predicated region
    $region34: #{tpu_custom_call.1} parent=1 // pred_check
      _
    $region35: #{tpu_custom_call.1} parent=1 // pred_check_branch
      %712 = sbr.rel (0) target = $region37
    $region36: #{tpu_custom_call.1} parent=1 // pred_region
      %713 = dma.done [#allocation4], 256
    $region37: #{tpu_custom_call.1} parent=1 // pred_fallthru
      _
    %714 = vsyncpa [#allocation3], 1
    %715 = vsyncpa [#allocation6], 1
    %716 = vsyncpa [#allocation4], 1

</llo_original>
